<compile_context>
chip_gen: v6e
topology: v6e:2x2x1
jax: 0.10.0
libtpu: 0.0.40
codegen_flags: <defaults>
</compile_context>

<pallas_src>
import functools

import jax
import jax.numpy as jnp
from jax.experimental import pallas as pl
from jax.experimental.pallas import tpu as pltpu

EPS = 1e-5  # torch.nn.BatchNorm2d default


# ---------------------------------------------------------------------------
# Kernels
# ---------------------------------------------------------------------------

def _cbn_fused_kernel(x_ref, gamma_ref, beta_ref, out_ref, *, n_true, s_true):
    # x_ref:     (B, CT, S_pad)  channel tile, spatial flattened onto lanes
    # gamma_ref: (B, CT, 1)      conditional scale  (hoisted 1x1 conv output)
    # beta_ref:  (B, CT, 1)      conditional shift
    x = x_ref[...]
    xf = x if x.dtype == jnp.float32 else x.astype(jnp.float32)
    _, _, s_pad = xf.shape

    # Two-pass biased BN statistics per channel over (B, S_true).
    s1 = jnp.sum(jnp.sum(xf, axis=2, keepdims=True), axis=0, keepdims=True)   # (1, CT, 1)
    mean = s1 * (1.0 / n_true)
    d = xf - mean
    if s_pad != s_true:
        # Zero-padded spatial columns must not contribute to the variance.
        lane = jax.lax.broadcasted_iota(jnp.int32, (1, 1, s_pad), 2)
        d = jnp.where(lane < s_true, d, 0.0)
    var = jnp.sum(jnp.sum(d * d, axis=2, keepdims=True), axis=0, keepdims=True) * (1.0 / n_true)
    inv = jax.lax.rsqrt(var + EPS)                                             # (1, CT, 1)

    # Fused affine: out = x * scale + shift, scale/shift are (B, CT, 1).
    scale = gamma_ref[...].astype(jnp.float32) * inv
    shift = beta_ref[...].astype(jnp.float32) - scale * mean
    out_ref[...] = (xf * scale + shift).astype(out_ref.dtype)


def _cbn_stats_kernel(x_ref, sum_ref, sq_ref):
    # Spatial-split fallback, pass 1: per-channel sum / sum-of-squares.
    # grid = (C // CT, S_pad // ST); axis 1 is the reduction (last, "arbitrary").
    j = pl.program_id(1)

    @pl.when(j == 0)
    def _():
        sum_ref[...] = jnp.zeros_like(sum_ref)
        sq_ref[...] = jnp.zeros_like(sq_ref)

    x = x_ref[...]
    xf = x if x.dtype == jnp.float32 else x.astype(jnp.float32)
    sum_ref[...] += jnp.sum(jnp.sum(xf, axis=2, keepdims=True), axis=0)        # (CT, 1)
    sq_ref[...] += jnp.sum(jnp.sum(xf * xf, axis=2, keepdims=True), axis=0)    # (CT, 1)


def _cbn_apply_kernel(x_ref, scale_ref, shift_ref, out_ref):
    # Spatial-split fallback, pass 2: pure elementwise affine.
    x = x_ref[...]
    xf = x if x.dtype == jnp.float32 else x.astype(jnp.float32)
    out_ref[...] = (xf * scale_ref[...] + shift_ref[...]).astype(out_ref.dtype)


# ---------------------------------------------------------------------------
# Tiling / VMEM planning
# ---------------------------------------------------------------------------

def _round_up(v, m):
    return ((v + m - 1) // m) * m


def _vmem_limit_bytes():
    """Per-generation scoped-VMEM limit: ~3/4 of physical per-core VMEM.
    v5e/v6e (128 MiB) -> 96 MiB; v7x (64 MiB per TC) -> 48 MiB; unknown -> 48 MiB."""
    cap = None
    try:
        cap = getattr(pltpu.get_tpu_info(), "vmem_capacity_bytes", None)
    except Exception:
        cap = None
    if not cap:
        cap = 64 * 1024 * 1024
    return int(min(cap * 3 // 4, 100 * 1024 * 1024))


def _pick_channel_tile(C, row_bytes_f32, budget_bytes):
    """Largest channel tile CT that (a) divides C, (b) satisfies the (8,128)
    block rule (CT % 8 == 0 or CT == C), (c) keeps one (B, CT, S_pad) f32 block
    under budget, and (d) keeps the grid length >= 4 (preferring an even number
    of tiles for v7x megacore) whenever C can legally be tiled, so the DMA
    pipeline never collapses to a single serial step."""
    if C % 8 != 0:
        return C  # cannot legally tile (e.g. C=4); single-block grid
    cands = [ct for ct in range(8, C + 1, 8) if C % ct == 0]
    fit = [ct for ct in cands if ct * row_bytes_f32 <= budget_bytes] or [8]
    for min_tiles, want_even in ((4, True), (4, False), (2, True), (2, False), (1, False)):
        sel = [ct for ct in fit
               if (C // ct) >= min_tiles and (not want_even or (C // ct) % 2 == 0)]
        if sel:
            return max(sel)
    return max(fit)


# ---------------------------------------------------------------------------
# Wrapper
# ---------------------------------------------------------------------------

def cbatchnorm2d(x, c, w_gamma, b_gamma, w_beta, b_beta, *,
                 channel_tile=None, spatial_tile=None, block_budget_bytes=None):
    """x: (B, C, H, W); c: (B, c_dim); conv weights: (C, c_dim); biases: (C,)."""
    B, C, H, W = x.shape
    assert c.shape[0] == B
    S = H * W
    itemsize = x.dtype.itemsize

    # Hoisted 1x1 Conv1d: gamma/beta = c @ W^T + b  (tiny XLA matmul, once per call).
    cf = c.astype(jnp.float32)
    gamma = cf @ w_gamma.astype(jnp.float32).T + b_gamma.astype(jnp.float32)[None, :]  # (B, C)
    beta = cf @ w_beta.astype(jnp.float32).T + b_beta.astype(jnp.float32)[None, :]     # (B, C)

    vmem_limit = _vmem_limit_bytes()
    budget = int(block_budget_bytes) if block_budget_bytes is not None else vmem_limit // 8

    # Lane-dense spatial axis.
    S128 = _round_up(S, 128)
    row_bytes_f32 = B * S128 * 4  # budget per channel-row at f32 working precision
    min_ct = 8 if C % 8 == 0 else C
    fused_ok = (min_ct * row_bytes_f32 <= budget) and (spatial_tile is None)

    x2 = x.reshape(B, C, S)

    if fused_ok:
        # ----- fused single-pass path -----
        CT = channel_tile if channel_tile is not None else _pick_channel_tile(C, row_bytes_f32, budget)
        assert C % CT == 0 and (CT % 8 == 0 or CT == C), "invalid channel tile"
        S_pad = S128
        x2p = x2 if S_pad == S else jnp.pad(x2, ((0, 0), (0, 0), (0, S_pad - S)))
        gamma3 = gamma[:, :, None]  # (B, C, 1)
        beta3 = beta[:, :, None]

        kernel = functools.partial(_cbn_fused_kernel, n_true=float(B * S), s_true=S)
        cost = pl.CostEstimate(
            flops=int(7 * B * C * S_pad),
            transcendentals=int(C),
            bytes_accessed=int(2 * B * C * S_pad * itemsize + 2 * B * C * 4),
        )
        out2 = pl.pallas_call(
            kernel,
            out_shape=jax.ShapeDtypeStruct((B, C, S_pad), x.dtype),
            grid=(C // CT,),
            in_specs=[
                pl.BlockSpec((B, CT, S_pad), lambda i: (0, i, 0)),  # x channel tile
                pl.BlockSpec((B, CT, 1), lambda i: (0, i, 0)),      # gamma tile
                pl.BlockSpec((B, CT, 1), lambda i: (0, i, 0)),      # beta tile
            ],
            out_specs=pl.BlockSpec((B, CT, S_pad), lambda i: (0, i, 0)),
            compiler_params=pltpu.CompilerParams(
                dimension_semantics=("parallel",),       # shard channel tiles across TCs
                vmem_limit_bytes=vmem_limit,
            ),
            cost_estimate=cost,
        )(x2p, gamma3, beta3)
        out2 = out2 if S_pad == S else out2[:, :, :S]
        return out2.reshape(B, C, H, W)

    # ----- spatial-split fallback (large B*H*W): stats pass + apply pass -----
    CT = channel_tile if channel_tile is not None else min_ct
    assert C % CT == 0 and (CT % 8 == 0 or CT == C), "invalid channel tile"
    ST = spatial_tile
    if ST is None:
        ST = max(128, (budget // max(B * CT * 4, 1)) // 128 * 128)
        ST = min(ST, S128)
    assert ST % 128 == 0, "spatial tile must be lane-dense (multiple of 128)"
    S_pad = _round_up(S, ST)
    x2p = x2 if S_pad == S else jnp.pad(x2, ((0, 0), (0, 0), (0, S_pad - S)))
    # TODO(synk): if even (B, CT=8, ST=128) exceeds the VMEM budget (extreme B),
    # a batch-split would be needed as well; not required at realistic shapes.

    grid = (C // CT, S_pad // ST)
    s1, s2 = pl.pallas_call(
        _cbn_stats_kernel,
        out_shape=(jax.ShapeDtypeStruct((C, 1), jnp.float32),
                   jax.ShapeDtypeStruct((C, 1), jnp.float32)),
        grid=grid,
        in_specs=[pl.BlockSpec((B, CT, ST), lambda i, j: (0, i, j))],
        out_specs=[pl.BlockSpec((CT, 1), lambda i, j: (i, 0)),
                   pl.BlockSpec((CT, 1), lambda i, j: (i, 0))],
        compiler_params=pltpu.CompilerParams(
            dimension_semantics=("parallel", "arbitrary"),   # reduction axis last
            vmem_limit_bytes=vmem_limit,
        ),
    )(x2p)

    # Tiny per-channel finalization + conditional affine folding (XLA ops on (B, C)).
    # (One-pass var with clamp here; padded zero columns contribute nothing to s1/s2.)
    n = float(B * S)
    mean = s1[:, 0] / n                                        # (C,)
    var = jnp.maximum(s2[:, 0] / n - mean * mean, 0.0)
    inv = jax.lax.rsqrt(var + EPS)
    scale = gamma * inv[None, :]                               # (B, C)
    shift = beta - scale * mean[None, :]
    scale3 = scale[:, :, None]                                 # (B, C, 1)
    shift3 = shift[:, :, None]

    out2 = pl.pallas_call(
        _cbn_apply_kernel,
        out_shape=jax.ShapeDtypeStruct((B, C, S_pad), x.dtype),
        grid=grid,
        in_specs=[
            pl.BlockSpec((B, CT, ST), lambda i, j: (0, i, j)),
            pl.BlockSpec((B, CT, 1), lambda i, j: (0, i, 0)),
            pl.BlockSpec((B, CT, 1), lambda i, j: (0, i, 0)),
        ],
        out_specs=pl.BlockSpec((B, CT, ST), lambda i, j: (0, i, j)),
        compiler_params=pltpu.CompilerParams(
            dimension_semantics=("parallel", "parallel"),
            vmem_limit_bytes=vmem_limit,
        ),
    )(x2p, scale3, shift3)
    out2 = out2 if S_pad == S else out2[:, :, :S]
    return out2.reshape(B, C, H, W)


# ---------------------------------------------------------------------------
# Reference + tests
# ---------------------------------------------------------------------------

def _reference(x, c, w_gamma, b_gamma, w_beta, b_beta):
    # Pure-JAX reference of the PyTorch forward (training-mode batch norm).
    gamma = c @ w_gamma.T + b_gamma              # (B, C)
    beta = c @ w_beta.T + b_beta                 # (B, C)
    mean = jnp.mean(x, axis=(0, 2, 3), keepdims=True)
    var = jnp.mean((x - mean) ** 2, axis=(0, 2, 3), keepdims=True)
    net = (x - mean) / jnp.sqrt(var + EPS)
    return gamma[:, :, None, None] * net + beta[:, :, None, None]


def _run_case(key, B, c_dim, C, H, W, **kwargs):
    kx, kc, kwg, kbg, kwb, kbb = jax.random.split(key, 6)
    x = jax.random.normal(kx, (B, C, H, W), dtype=jnp.float32)
    c = jax.random.normal(kc, (B, c_dim), dtype=jnp.float32)
    # Small random init (the module's reset_parameters() would be identity
    # conditioning; random values exercise the conditional path).
    w_gamma = 0.1 * jax.random.normal(kwg, (C, c_dim), dtype=jnp.float32)
    b_gamma = jnp.ones((C,), jnp.float32) + 0.1 * jax.random.normal(kbg, (C,), dtype=jnp.float32)
    w_beta = 0.1 * jax.random.normal(kwb, (C, c_dim), dtype=jnp.float32)
    b_beta = 0.1 * jax.random.normal(kbb, (C,), dtype=jnp.float32)

    out = cbatchnorm2d(x, c, w_gamma, b_gamma, w_beta, b_beta, **kwargs)
    out = jax.block_until_ready(out)
    ref = _reference(x, c, w_gamma, b_gamma, w_beta, b_beta)
    assert out.shape == (B, C, H, W)
    assert jnp.allclose(out, ref, atol=1e-4, rtol=1e-4), "mismatch vs reference"


if __name__ == "__main__":
    key = jax.random.PRNGKey(0)
    k1, k2, k3, k4 = jax.random.split(key, 4)
    # 1) Canonical module-scale shape (C=4 < 8 -> single channel block, lane-dense S=256).
    _run_case(k1, B=2, c_dim=8, C=4, H=16, W=16)
    # 2) Channel-tiled grid: C=32 -> 4 tiles of 8 (pipelined, megacore-friendly).
    _run_case(k2, B=2, c_dim=8, C=32, H=16, W=16)
    # 3) H*W=64 is not lane-dense -> wrapper zero-pads S to 128; stats use true n.
    _run_case(k3, B=2, c_dim=8, C=16, H=8, W=8)
    # 4) Forced spatial-split fallback (stats pass + apply pass) at a small shape.
    _run_case(k4, B=2, c_dim=8, C=16, H=16, W=16, spatial_tile=128)
    print("KERNEL_OK")
</pallas_src>

<mosaic_0001>
module attributes {stable_mosaic.version = 11 : i64} {
  func.func @_cbn_fused_kernel(%arg0: i32, %arg1: memref<2x4x256xf32, #tpu.memory_space<vmem>>, %arg2: memref<2x4x1xf32, #tpu.memory_space<vmem>>, %arg3: memref<2x4x1xf32, #tpu.memory_space<vmem>>, %arg4: memref<2x4x256xf32, #tpu.memory_space<vmem>>) attributes {dimension_semantics = [#tpu.dimension_semantics<parallel>], iteration_bounds = array<i64: 1>, scalar_prefetch = 0 : i64, scratch_operands = 0 : i64, tpu.core_type = #tpu.core_type<tc>, window_params = [{transform_indices = @transform_0, window_bounds = array<i64: 2, 4, 256>}, {transform_indices = @transform_1, window_bounds = array<i64: 2, 4, 1>}, {transform_indices = @transform_2, window_bounds = array<i64: 2, 4, 1>}, {transform_indices = @transform_3, window_bounds = array<i64: 2, 4, 256>}]} {
    %c0 = arith.constant 0 : index
    %c0_0 = arith.constant 0 : index
    %c0_1 = arith.constant 0 : index
    %0 = vector.load %arg1[%c0, %c0_0, %c0_1] : memref<2x4x256xf32, #tpu.memory_space<vmem>>, vector<2x4x256xf32>
    %cst = arith.constant dense<0.000000e+00> : vector<2x4xf32>
    %1 = vector.multi_reduction <add>, %0, %cst [2] : vector<2x4x256xf32> to vector<2x4xf32>
    %2 = vector.shape_cast %1 : vector<2x4xf32> to vector<2x4x1xf32>
    %cst_2 = arith.constant dense<0.000000e+00> : vector<4x1xf32>
    %3 = vector.multi_reduction <add>, %2, %cst_2 [0] : vector<2x4x1xf32> to vector<4x1xf32>
    %4 = vector.shape_cast %3 : vector<4x1xf32> to vector<1x4x1xf32>
    %cst_3 = arith.constant 0.001953125 : f32
    %5 = vector.broadcast %cst_3 : f32 to vector<1x4x1xf32>
    %6 = arith.mulf %4, %5 : vector<1x4x1xf32>
    %7 = vector.broadcast %6 : vector<1x4x1xf32> to vector<2x4x256xf32>
    %8 = arith.subf %0, %7 : vector<2x4x256xf32>
    %9 = arith.mulf %8, %8 : vector<2x4x256xf32>
    %cst_4 = arith.constant dense<0.000000e+00> : vector<2x4xf32>
    %10 = vector.multi_reduction <add>, %9, %cst_4 [2] : vector<2x4x256xf32> to vector<2x4xf32>
    %11 = vector.shape_cast %10 : vector<2x4xf32> to vector<2x4x1xf32>
    %cst_5 = arith.constant dense<0.000000e+00> : vector<4x1xf32>
    %12 = vector.multi_reduction <add>, %11, %cst_5 [0] : vector<2x4x1xf32> to vector<4x1xf32>
    %13 = vector.shape_cast %12 : vector<4x1xf32> to vector<1x4x1xf32>
    %cst_6 = arith.constant 0.001953125 : f32
    %14 = vector.broadcast %cst_6 : f32 to vector<1x4x1xf32>
    %15 = arith.mulf %13, %14 : vector<1x4x1xf32>
    %cst_7 = arith.constant 9.99999974E-6 : f32
    %16 = vector.broadcast %cst_7 : f32 to vector<1x4x1xf32>
    %17 = arith.addf %15, %16 : vector<1x4x1xf32>
    %18 = math.rsqrt %17 : vector<1x4x1xf32>
    %c0_8 = arith.constant 0 : index
    %c0_9 = arith.constant 0 : index
    %c0_10 = arith.constant 0 : index
    %19 = vector.load %arg2[%c0_8, %c0_9, %c0_10] : memref<2x4x1xf32, #tpu.memory_space<vmem>>, vector<2x4x1xf32>
    %20 = vector.broadcast %18 : vector<1x4x1xf32> to vector<2x4x1xf32>
    %21 = arith.mulf %19, %20 : vector<2x4x1xf32>
    %c0_11 = arith.constant 0 : index
    %c0_12 = arith.constant 0 : index
    %c0_13 = arith.constant 0 : index
    %22 = vector.load %arg3[%c0_11, %c0_12, %c0_13] : memref<2x4x1xf32, #tpu.memory_space<vmem>>, vector<2x4x1xf32>
    %23 = vector.broadcast %6 : vector<1x4x1xf32> to vector<2x4x1xf32>
    %24 = arith.mulf %21, %23 : vector<2x4x1xf32>
    %25 = arith.subf %22, %24 : vector<2x4x1xf32>
    %26 = vector.broadcast %21 : vector<2x4x1xf32> to vector<2x4x256xf32>
    %27 = arith.mulf %0, %26 : vector<2x4x256xf32>
    %28 = vector.broadcast %25 : vector<2x4x1xf32> to vector<2x4x256xf32>
    %29 = arith.addf %27, %28 : vector<2x4x256xf32>
    %c0_14 = arith.constant 0 : index
    %c0_15 = arith.constant 0 : index
    %c0_16 = arith.constant 0 : index
    %30 = vector.load %arg4[%c0_14, %c0_15, %c0_16] : memref<2x4x256xf32, #tpu.memory_space<vmem>>, vector<2x4x256xf32>
    tpu.vector_store %arg4[%c0_14, %c0_15, %c0_16], %29 {strides = array<i32>} : memref<2x4x256xf32, #tpu.memory_space<vmem>>, vector<2x4x256xf32>,
    return
  }
  func.func @transform_0(%arg0: i32) -> (i32, i32, i32) {
    %c0_i32 = arith.constant 0 : i32
    %c0_i32_0 = arith.constant 0 : i32
    %c0_i32_1 = arith.constant 0 : i32
    return %c0_i32, %arg0, %c0_i32_0 : i32, i32, i32
  }
  func.func @transform_1(%arg0: i32) -> (i32, i32, i32) {
    %c0_i32 = arith.constant 0 : i32
    %c0_i32_0 = arith.constant 0 : i32
    %c0_i32_1 = arith.constant 0 : i32
    return %c0_i32, %arg0, %c0_i32_0 : i32, i32, i32
  }
  func.func @transform_2(%arg0: i32) -> (i32, i32, i32) {
    %c0_i32 = arith.constant 0 : i32
    %c0_i32_0 = arith.constant 0 : i32
    %c0_i32_1 = arith.constant 0 : i32
    return %c0_i32, %arg0, %c0_i32_0 : i32, i32, i32
  }
  func.func @transform_3(%arg0: i32) -> (i32, i32, i32) {
    %c0_i32 = arith.constant 0 : i32
    %c0_i32_0 = arith.constant 0 : i32
    %c0_i32_1 = arith.constant 0 : i32
    return %c0_i32, %arg0, %c0_i32_0 : i32, i32, i32
  }
}

</mosaic_0001>

<llo_original>
// kernel: tpu_custom_call.1
$region0: #{tpu_custom_call.1}
  #allocation0 [shape = 'u32[]', space=smem, size = 0x4, offset = 0x4, fixed_abs, tag = 'smem constant byte address 0x4 - core index']
  #allocation1 [shape = 'u32[144,128]{1,0:T(1,128)}', space=vmem, size = 0x12000, scoped, tag = 'internal scratch']
  %s0 = inlined_call_operand.vmem [shape: f32[2,4,256], index: 0, kind: input, shape index: {}]
  %s1 = inlined_call_operand.vmem [shape: f32[2,4,1], index: 1, kind: input, shape index: {}]
  %s2 = inlined_call_operand.vmem [shape: f32[2,4,1], index: 2, kind: input, shape index: {}]
  %s3 = inlined_call_operand.hbm [shape: f32[2,4,256], index: 3, kind: output, shape index: {}]
  %s4 = sld [smem:[#allocation0]]
  $region22: #{tpu_custom_call.1} parent=0
    _
  %s6 = ssub.s32 1, %s4
  %s7 = scalar_select 0, %s6, %s4
  $region1: #{tpu_custom_call.1} parent=0
    #allocation2 [shape = 'u8[8192]{0}', space=vmem, size = 0x2000, scoped, tag = 'output window, operand 0, single buffered']
    #allocation3 [shape = 's32[1]{0}', space=sflag, size = 0x4, scoped, tag = 'scoped memory for tpu_custom_call.1']
    %8 = vsyncpa [#allocation3], 0
    // Predicated region
    $region2: #{tpu_custom_call.1} parent=1 // pred_check
      _
    $region3: #{tpu_custom_call.1} parent=1 // pred_check_branch
      %10 = sbr.rel (0) target = $region5
    $region4: #{tpu_custom_call.1} parent=1 // pred_region
      _
    $region5: #{tpu_custom_call.1} parent=1 // pred_fallthru
      _
    // Predicated region
    $region6: #{tpu_custom_call.1} parent=1 // pred_check
      _
    $region7: #{tpu_custom_call.1} parent=1 // pred_check_branch
      %12 = sbr.rel (0) target = $region9
    $region8: #{tpu_custom_call.1} parent=1 // pred_region
      _
    $region9: #{tpu_custom_call.1} parent=1 // pred_fallthru
      _
    // Predicated region
    $region10: #{tpu_custom_call.1} parent=1 // pred_check
      _
    $region11: #{tpu_custom_call.1} parent=1 // pred_check_branch
      %14 = sbr.rel (0) target = $region13
    $region12: #{tpu_custom_call.1} parent=1 // pred_region
      _
    $region13: #{tpu_custom_call.1} parent=1 // pred_fallthru
      _
    %v15 = vld [vmem:[%s0] sm:$0xff]
    %v16 = vld [vmem:[%s0 + $0x8] sm:$0xff]
    %v19 = vcombine.high %v15, %v15
    %v20 = vcombine.high %v16, %v16
    %vm23 = vcmask 1043456
    %v24 = vsel %vm23, %v15, 0.0
    %v25 = vsel %vm23, %v19, 0.0
    %v26 = vadd.f32 %v24, %v25
    %27 = vadd.xlane.f32.xlu0 %v26
    %v28 = vpop.xlane.xlu0 %27
    %v29 = vsel %vm23, %v16, 0.0
    %v30 = vsel %vm23, %v20, 0.0
    %v31 = vadd.f32 %v29, %v30
    %32 = vadd.xlane.f32.xlu0 %v31
    %v33 = vpop.xlane.xlu0 %32
    %v34 = vsel %vm23, %v28, 0.0
    %v35 = vsel %vm23, %v33, 0.0
    %v36 = vadd.f32 %v34, %v35
    %v37 = vmul.f32 %v36, 0.001953125
    %v40 = vunpack.c.l.s4 839922192
    %v41 = vunpack.c.0.s8 %v40
    %v42 = vlaneseq
    %v43 = vshrl.u32 %v42, 7
    %v44 = vsub.s32 %v41, %v43
    %v45 = vrot.slane %v37, %v44
    %v47 = vsub.f32 %v15, %v45
    %v48 = vsub.f32 %v16, %v45
    %v49 = vmul.f32 %v47, %v47
    %v50 = vmul.f32 %v48, %v48
    %v53 = vcombine.high %v49, %v49
    %v54 = vcombine.high %v50, %v50
    %v57 = vsel %vm23, %v49, 0.0
    %v58 = vsel %vm23, %v53, 0.0
    %v59 = vadd.f32 %v57, %v58
    %60 = vadd.xlane.f32.xlu0 %v59
    %v61 = vpop.xlane.xlu0 %60
    %v62 = vsel %vm23, %v50, 0.0
    %v63 = vsel %vm23, %v54, 0.0
    %v64 = vadd.f32 %v62, %v63
    %65 = vadd.xlane.f32.xlu0 %v64
    %v66 = vpop.xlane.xlu0 %65
    %v67 = vsel %vm23, %v61, 0.0
    %v68 = vsel %vm23, %v66, 0.0
    %v69 = vadd.f32 %v67, %v68
    %v70 = vmul.f32 %v69, 0.001953125
    %v71 = vadd.f32 %v70, 1e-05
    %v72 = vrsqrt.pop %v71
    %v73 = vld [vmem:[%s1] sm:$0xf]
    %v74 = vld [vmem:[%s1 + $0x4] sm:$0xf]
    %v75 = vmul.f32 %v73, %v72
    %v76 = vmul.f32 %v74, %v72
    %v77 = vld [vmem:[%s2] sm:$0xf]
    %v78 = vld [vmem:[%s2 + $0x4] sm:$0xf]
    %v79 = vmul.f32 %v75, %v37
    %v80 = vmul.f32 %v76, %v37
    %v81 = vsub.f32 %v77, %v79
    %v82 = vsub.f32 %v78, %v80
    %84 = vset.pattern.permute.xlu0 0
    %85 = vperm.xlu0 %84, %v75
    %v86 = vpop.permute.xlu0 %85
    %88 = vset.pattern.permute.xlu0 0
    %89 = vperm.xlu0 %88, %v76
    %v90 = vpop.permute.xlu0 %89
    %v92 = vunpack.c.l.s4 839922192
    %v93 = vunpack.c.0.s8 %v92
    %v94 = vlaneseq
    %v95 = vshrl.u32 %v94, 7
    %v96 = vsub.s32 %v93, %v95
    %v97 = vrot.slane %v86, %v96
    %v99 = vunpack.c.l.s4 839922192
    %v100 = vunpack.c.0.s8 %v99
    %v101 = vlaneseq
    %v102 = vshrl.u32 %v101, 7
    %v103 = vsub.s32 %v100, %v102
    %v104 = vrot.slane %v90, %v103
    %v107 = vmul.f32 %v15, %v97
    %v108 = vmul.f32 %v16, %v104
    %110 = vset.pattern.permute.xlu0 0
    %111 = vperm.xlu0 %110, %v81
    %v112 = vpop.permute.xlu0 %111
    %114 = vset.pattern.permute.xlu0 0
    %115 = vperm.xlu0 %114, %v82
    %v116 = vpop.permute.xlu0 %115
    %v118 = vunpack.c.l.s4 839922192
    %v119 = vunpack.c.0.s8 %v118
    %v120 = vlaneseq
    %v121 = vshrl.u32 %v120, 7
    %v122 = vsub.s32 %v119, %v121
    %v123 = vrot.slane %v112, %v122
    %v125 = vunpack.c.l.s4 839922192
    %v126 = vunpack.c.0.s8 %v125
    %v127 = vlaneseq
    %v128 = vshrl.u32 %v127, 7
    %v129 = vsub.s32 %v126, %v128
    %v130 = vrot.slane %v116, %v129
    %v133 = vadd.f32 %v107, %v123
    %v134 = vadd.f32 %v108, %v130
    %135 = vst [vmem:[#allocation2] sm:$0xff] %v133
    %136 = vst [vmem:[#allocation2 + $0x8] sm:$0xff] %v134
    // Predicated region
    $region14: #{tpu_custom_call.1} parent=1 // pred_check
      _
    $region15: #{tpu_custom_call.1} parent=1 // pred_check_branch
      %138 = sbr.rel (0) target = $region17
    $region16: #{tpu_custom_call.1} parent=1 // pred_region
      %s140 = ssub.s32 256, 256
      %141 = vsyncadd [#allocation3], %s140
      %s142 = sshll.u32 [#allocation2], 4
      %s143 = int_to_ptr.vmem [resolvable:$true] %s142
      %148 = dma.vmem_to_hbm [thread:$0]  %s143, 256, %s3, [#allocation3], 128, 128, 8
    $region17: #{tpu_custom_call.1} parent=1 // pred_fallthru
      _
    // Predicated region
    $region18: #{tpu_custom_call.1} parent=1 // pred_check
      _
    $region19: #{tpu_custom_call.1} parent=1 // pred_check_branch
      %150 = sbr.rel (0) target = $region21
    $region20: #{tpu_custom_call.1} parent=1 // pred_region
      %151 = dma.done [#allocation3], 256
    $region21: #{tpu_custom_call.1} parent=1 // pred_fallthru
      _
    %152 = vsyncpa [#allocation3], 1

</llo_original>
